<compile_context>
chip_gen: v5e
topology: v5e:2x2
jax: 0.10.0
libtpu: 0.0.40
codegen_flags: <defaults>
</compile_context>

<pallas_src>
import functools

import jax
import jax.numpy as jnp
from jax import lax
from jax.experimental import pallas as pl
from jax.experimental.pallas import tpu as pltpu


LAYER_SIZES = [(12, 256), (256, 128), (128, 64), (64, 32), (32, 1)]


def mlp_kernel(x_ref,
               w1_ref, b1_ref,
               w2_ref, b2_ref,
               w3_ref, b3_ref,
               w4_ref, b4_ref,
               w5_ref, b5_ref,
               o_ref):
    """One batch tile: (Linear+ReLU) x4 then Linear, all intermediates on-chip."""
    h = x_ref[...]                                        # (TM, 12) f32

    def dense_relu(h, w_ref, b_ref):
        # bf16 x bf16 -> f32 accumulation on the MXU; bias + ReLU in f32 (VPU).
        a = jnp.dot(h.astype(jnp.bfloat16), w_ref[...],
                    preferred_element_type=jnp.float32)
        return jnp.maximum(a + b_ref[...], 0.0)

    h = dense_relu(h, w1_ref, b1_ref)                     # (TM, 256)
    h = dense_relu(h, w2_ref, b2_ref)                     # (TM, 128)
    h = dense_relu(h, w3_ref, b3_ref)                     # (TM, 64)
    h = dense_relu(h, w4_ref, b4_ref)                     # (TM, 32)

    # Layer 5: w5_ref is the (1, 32) transposed weight row (kept f32 for the
    # small final projection).  Contract the last dims of both operands
    # -> (1, TM) lane-dense row (no masked stores, no padded-lane writeback).
    out_row = lax.dot_general(
        w5_ref[...], h,
        dimension_numbers=(((1,), (1,)), ((), ())),
        preferred_element_type=jnp.float32)               # (1, TM)
    o_ref[...] = (out_row + b5_ref[...]).astype(o_ref.dtype)


def _round_up(n, m):
    return ((n + m - 1) // m) * m


@functools.partial(jax.jit, static_argnames=("block_m",))
def mlp_forward(x, params, block_m=512):
    """x: (batch, 12) f32. params: list of (W, b), W (in, out) f32, b (1, out) f32.

    block_m: batch-tile size (sweep 256/512/1024 per chip; 512 is a good default).
    """
    batch, in_features = x.shape

    # Pick the batch tile and pad the batch so the grid divides evenly.
    if batch >= block_m:
        tm = block_m                       # multiple of 128 -> lane-dense output tiles
    else:
        tm = _round_up(max(batch, 1), 8)   # single full-extent tile
    batch_p = _round_up(batch, tm)
    grid = (batch_p // tm,)

    if batch_p != batch:
        x = jnp.pad(x, ((0, batch_p - batch), (0, 0)))

    (w1, b1), (w2, b2), (w3, b3), (w4, b4), (w5, b5) = params
    # Cast weights to bf16 once here (tiny, not per grid step in the kernel).
    w1, w2, w3, w4 = (w.astype(jnp.bfloat16) for w in (w1, w2, w3, w4))
    w5_row = w5.reshape(1, -1)             # (1, 32), kept f32 for the final layer
    # b1..b4 stay f32 (1, out); b5 stays f32 (1, 1).

    x_spec = pl.BlockSpec((tm, in_features), lambda i: (i, 0))

    def const_spec(a):                     # VMEM-resident, DMA'd once
        return pl.BlockSpec(a.shape, lambda i: (0, 0))

    consts = (w1, b1, w2, b2, w3, b3, w4, b4, w5_row, b5)
    in_specs = [x_spec] + [const_spec(a) for a in consts]
    out_specs = pl.BlockSpec((1, tm), lambda i: (0, i))

    flops = 2 * batch_p * sum(fi * fo for fi, fo in LAYER_SIZES)
    weight_bytes = sum(a.size * a.dtype.itemsize for a in consts)
    bytes_accessed = (x.size * x.dtype.itemsize      # streamed input
                      + weight_bytes                 # resident weights (once)
                      + batch_p * 4)                 # output row
    cost = pl.CostEstimate(flops=flops, transcendentals=0,
                           bytes_accessed=bytes_accessed)

    out_row = pl.pallas_call(
        mlp_kernel,
        out_shape=jax.ShapeDtypeStruct((1, batch_p), jnp.float32),
        grid=grid,
        in_specs=in_specs,
        out_specs=out_specs,
        compiler_params=pltpu.CompilerParams(
            dimension_semantics=("parallel",)),
        cost_estimate=cost,
    )(x, *consts)

    # (1, batch_p) lane-dense slab -> (batch, 1), dropping the padded rows.
    return out_row[0, :batch, None]


def init_params(key):
    """Mirror PyTorch nn.Linear default init: U(-1/sqrt(fan_in), 1/sqrt(fan_in))."""
    params = []
    for fan_in, fan_out in LAYER_SIZES:
        key, kw, kb = jax.random.split(key, 3)
        bound = 1.0 / (fan_in ** 0.5)
        w = jax.random.uniform(kw, (fan_in, fan_out), jnp.float32, -bound, bound)
        b = jax.random.uniform(kb, (1, fan_out), jnp.float32, -bound, bound)
        params.append((w, b))
    return params


def reference_forward_f32(x, params):
    """Pure f32 reference == the PyTorch module's math."""
    h = x
    for i, (w, b) in enumerate(params):
        h = jnp.dot(h, w, preferred_element_type=jnp.float32) + b
        if i < len(params) - 1:
            h = jnp.maximum(h, 0.0)
    return h


def reference_forward_matched(x, params):
    """Reference using the same bf16-fed / f32-accumulate semantics as the kernel."""
    h = x
    for w, b in params[:-1]:
        h = jnp.dot(h.astype(jnp.bfloat16), w.astype(jnp.bfloat16),
                    preferred_element_type=jnp.float32) + b
        h = jnp.maximum(h, 0.0)
    w5, b5 = params[-1]
    return jnp.dot(h, w5, preferred_element_type=jnp.float32) + b5


if __name__ == "__main__":
    key = jax.random.PRNGKey(0)
    key, kx = jax.random.split(key)
    params = init_params(key)

    # Single-tile case, padded multi-tile case, and an exact multi-tile case.
    for batch in (8, 777, 2048):
        kx, kb = jax.random.split(kx)
        x = jax.random.normal(kb, (batch, 12), jnp.float32)

        out = mlp_forward(x, params)
        out = jax.block_until_ready(out)
        assert out.shape == (batch, 1)

        # Tight check vs a reference with identical bf16-matmul semantics.
        ref_m = reference_forward_matched(x, params)
        assert jnp.allclose(out, ref_m, atol=5e-3, rtol=5e-3), \
            f"mismatch vs matched reference (batch={batch})"

        # Loose sanity check vs the pure-f32 PyTorch-equivalent math.
        ref_f = reference_forward_f32(x, params)
        assert jnp.allclose(out, ref_f, atol=1e-1, rtol=1e-1), \
            f"mismatch vs f32 reference (batch={batch})"

    print("KERNEL_OK")
</pallas_src>

<mosaic_0001>
module attributes {stable_mosaic.version = 11 : i64} {
  func.func @mlp_kernel(%arg0: i32, %arg1: memref<8x12xf32, #tpu.memory_space<vmem>>, %arg2: memref<12x256xbf16, #tpu.memory_space<vmem>>, %arg3: memref<1x256xf32, #tpu.memory_space<vmem>>, %arg4: memref<256x128xbf16, #tpu.memory_space<vmem>>, %arg5: memref<1x128xf32, #tpu.memory_space<vmem>>, %arg6: memref<128x64xbf16, #tpu.memory_space<vmem>>, %arg7: memref<1x64xf32, #tpu.memory_space<vmem>>, %arg8: memref<64x32xbf16, #tpu.memory_space<vmem>>, %arg9: memref<1x32xf32, #tpu.memory_space<vmem>>, %arg10: memref<1x32xf32, #tpu.memory_space<vmem>>, %arg11: memref<1x1xf32, #tpu.memory_space<vmem>>, %arg12: memref<1x8xf32, #tpu.memory_space<vmem>>) attributes {dimension_semantics = [#tpu.dimension_semantics<parallel>], iteration_bounds = array<i64: 1>, scalar_prefetch = 0 : i64, scratch_operands = 0 : i64, tpu.core_type = #tpu.core_type<tc>, window_params = [{transform_indices = @transform_0, window_bounds = array<i64: 8, 12>}, {pipeline_mode = #tpu.pipeline_mode<synchronous>, transform_indices = @transform_1, window_bounds = array<i64: 12, 256>}, {pipeline_mode = #tpu.pipeline_mode<synchronous>, transform_indices = @transform_2, window_bounds = array<i64: 1, 256>}, {pipeline_mode = #tpu.pipeline_mode<synchronous>, transform_indices = @transform_3, window_bounds = array<i64: 256, 128>}, {pipeline_mode = #tpu.pipeline_mode<synchronous>, transform_indices = @transform_4, window_bounds = array<i64: 1, 128>}, {pipeline_mode = #tpu.pipeline_mode<synchronous>, transform_indices = @transform_5, window_bounds = array<i64: 128, 64>}, {pipeline_mode = #tpu.pipeline_mode<synchronous>, transform_indices = @transform_6, window_bounds = array<i64: 1, 64>}, {pipeline_mode = #tpu.pipeline_mode<synchronous>, transform_indices = @transform_7, window_bounds = array<i64: 64, 32>}, {pipeline_mode = #tpu.pipeline_mode<synchronous>, transform_indices = @transform_8, window_bounds = array<i64: 1, 32>}, {pipeline_mode = #tpu.pipeline_mode<synchronous>, transform_indices = @transform_9, window_bounds = array<i64: 1, 32>}, {pipeline_mode = #tpu.pipeline_mode<synchronous>, transform_indices = @transform_10, window_bounds = array<i64: 1, 1>}, {transform_indices = @transform_11, window_bounds = array<i64: 1, 8>}]} {
    %c0 = arith.constant 0 : index
    %c0_0 = arith.constant 0 : index
    %0 = vector.load %arg1[%c0, %c0_0] : memref<8x12xf32, #tpu.memory_space<vmem>>, vector<8x12xf32>
    %1 = arith.truncf %0 : vector<8x12xf32> to vector<8x12xbf16>
    %c0_1 = arith.constant 0 : index
    %c0_2 = arith.constant 0 : index
    %2 = vector.load %arg2[%c0_1, %c0_2] : memref<12x256xbf16, #tpu.memory_space<vmem>>, vector<12x256xbf16>
    %cst = arith.constant dense<0.000000e+00> : vector<8x256xf32>
    %3 = tpu.matmul %1, %2, %cst {dimension_numbers = #tpu.dot_dimension_numbers<[1], [0], [0], [1], [0, 0, 1, 1], [], []>} : vector<8x12xbf16>, vector<12x256xbf16>, vector<8x256xf32> -> vector<8x256xf32>
    %c0_3 = arith.constant 0 : index
    %c0_4 = arith.constant 0 : index
    %4 = vector.load %arg3[%c0_3, %c0_4] : memref<1x256xf32, #tpu.memory_space<vmem>>, vector<1x256xf32>
    %5 = vector.broadcast %4 : vector<1x256xf32> to vector<8x256xf32>
    %6 = arith.addf %3, %5 : vector<8x256xf32>
    %cst_5 = arith.constant 0.000000e+00 : f32
    %7 = vector.broadcast %cst_5 : f32 to vector<8x256xf32>
    %8 = arith.maximumf %6, %7 : vector<8x256xf32>
    %9 = arith.truncf %8 : vector<8x256xf32> to vector<8x256xbf16>
    %c0_6 = arith.constant 0 : index
    %c0_7 = arith.constant 0 : index
    %10 = vector.load %arg4[%c0_6, %c0_7] : memref<256x128xbf16, #tpu.memory_space<vmem>>, vector<256x128xbf16>
    %cst_8 = arith.constant dense<0.000000e+00> : vector<8x128xf32>
    %11 = tpu.matmul %9, %10, %cst_8 {dimension_numbers = #tpu.dot_dimension_numbers<[1], [0], [0], [1], [0, 0, 1, 1], [], []>} : vector<8x256xbf16>, vector<256x128xbf16>, vector<8x128xf32> -> vector<8x128xf32>
    %c0_9 = arith.constant 0 : index
    %c0_10 = arith.constant 0 : index
    %12 = vector.load %arg5[%c0_9, %c0_10] : memref<1x128xf32, #tpu.memory_space<vmem>>, vector<1x128xf32>
    %13 = vector.broadcast %12 : vector<1x128xf32> to vector<8x128xf32>
    %14 = arith.addf %11, %13 : vector<8x128xf32>
    %cst_11 = arith.constant 0.000000e+00 : f32
    %15 = vector.broadcast %cst_11 : f32 to vector<8x128xf32>
    %16 = arith.maximumf %14, %15 : vector<8x128xf32>
    %17 = arith.truncf %16 : vector<8x128xf32> to vector<8x128xbf16>
    %c0_12 = arith.constant 0 : index
    %c0_13 = arith.constant 0 : index
    %18 = vector.load %arg6[%c0_12, %c0_13] : memref<128x64xbf16, #tpu.memory_space<vmem>>, vector<128x64xbf16>
    %cst_14 = arith.constant dense<0.000000e+00> : vector<8x64xf32>
    %19 = tpu.matmul %17, %18, %cst_14 {dimension_numbers = #tpu.dot_dimension_numbers<[1], [0], [0], [1], [0, 0, 1, 1], [], []>} : vector<8x128xbf16>, vector<128x64xbf16>, vector<8x64xf32> -> vector<8x64xf32>
    %c0_15 = arith.constant 0 : index
    %c0_16 = arith.constant 0 : index
    %20 = vector.load %arg7[%c0_15, %c0_16] : memref<1x64xf32, #tpu.memory_space<vmem>>, vector<1x64xf32>
    %21 = vector.broadcast %20 : vector<1x64xf32> to vector<8x64xf32>
    %22 = arith.addf %19, %21 : vector<8x64xf32>
    %cst_17 = arith.constant 0.000000e+00 : f32
    %23 = vector.broadcast %cst_17 : f32 to vector<8x64xf32>
    %24 = arith.maximumf %22, %23 : vector<8x64xf32>
    %25 = arith.truncf %24 : vector<8x64xf32> to vector<8x64xbf16>
    %c0_18 = arith.constant 0 : index
    %c0_19 = arith.constant 0 : index
    %26 = vector.load %arg8[%c0_18, %c0_19] : memref<64x32xbf16, #tpu.memory_space<vmem>>, vector<64x32xbf16>
    %cst_20 = arith.constant dense<0.000000e+00> : vector<8x32xf32>
    %27 = tpu.matmul %25, %26, %cst_20 {dimension_numbers = #tpu.dot_dimension_numbers<[1], [0], [0], [1], [0, 0, 1, 1], [], []>} : vector<8x64xbf16>, vector<64x32xbf16>, vector<8x32xf32> -> vector<8x32xf32>
    %c0_21 = arith.constant 0 : index
    %c0_22 = arith.constant 0 : index
    %28 = vector.load %arg9[%c0_21, %c0_22] : memref<1x32xf32, #tpu.memory_space<vmem>>, vector<1x32xf32>
    %29 = vector.broadcast %28 : vector<1x32xf32> to vector<8x32xf32>
    %30 = arith.addf %27, %29 : vector<8x32xf32>
    %cst_23 = arith.constant 0.000000e+00 : f32
    %31 = vector.broadcast %cst_23 : f32 to vector<8x32xf32>
    %32 = arith.maximumf %30, %31 : vector<8x32xf32>
    %c0_24 = arith.constant 0 : index
    %c0_25 = arith.constant 0 : index
    %33 = vector.load %arg10[%c0_24, %c0_25] : memref<1x32xf32, #tpu.memory_space<vmem>>, vector<1x32xf32>
    %cst_26 = arith.constant dense<0.000000e+00> : vector<1x8xf32>
    %34 = tpu.matmul %33, %32, %cst_26 {dimension_numbers = #tpu.dot_dimension_numbers<[1], [1], [0], [0], [0, 0, 1, 0], [], []>} : vector<1x32xf32>, vector<8x32xf32>, vector<1x8xf32> -> vector<1x8xf32>
    %c0_27 = arith.constant 0 : index
    %c0_28 = arith.constant 0 : index
    %35 = vector.load %arg11[%c0_27, %c0_28] : memref<1x1xf32, #tpu.memory_space<vmem>>, vector<1x1xf32>
    %36 = vector.broadcast %35 : vector<1x1xf32> to vector<1x8xf32>
    %37 = arith.addf %34, %36 : vector<1x8xf32>
    %c0_29 = arith.constant 0 : index
    %c0_30 = arith.constant 0 : index
    %38 = vector.load %arg12[%c0_29, %c0_30] : memref<1x8xf32, #tpu.memory_space<vmem>>, vector<1x8xf32>
    tpu.vector_store %arg12[%c0_29, %c0_30], %37 {strides = array<i32>} : memref<1x8xf32, #tpu.memory_space<vmem>>, vector<1x8xf32>,
    return
  }
  func.func @transform_0(%arg0: i32) -> (i32, i32) {
    %c0_i32 = arith.constant 0 : i32
    %c0_i32_0 = arith.constant 0 : i32
    return %arg0, %c0_i32 : i32, i32
  }
  func.func @transform_1(%arg0: i32) -> (i32, i32) {
    %c0_i32 = arith.constant 0 : i32
    %c0_i32_0 = arith.constant 0 : i32
    %c0_i32_1 = arith.constant 0 : i32
    return %c0_i32, %c0_i32_0 : i32, i32
  }
  func.func @transform_2(%arg0: i32) -> (i32, i32) {
    %c0_i32 = arith.constant 0 : i32
    %c0_i32_0 = arith.constant 0 : i32
    %c0_i32_1 = arith.constant 0 : i32
    return %c0_i32, %c0_i32_0 : i32, i32
  }
  func.func @transform_3(%arg0: i32) -> (i32, i32) {
    %c0_i32 = arith.constant 0 : i32
    %c0_i32_0 = arith.constant 0 : i32
    %c0_i32_1 = arith.constant 0 : i32
    return %c0_i32, %c0_i32_0 : i32, i32
  }
  func.func @transform_4(%arg0: i32) -> (i32, i32) {
    %c0_i32 = arith.constant 0 : i32
    %c0_i32_0 = arith.constant 0 : i32
    %c0_i32_1 = arith.constant 0 : i32
    return %c0_i32, %c0_i32_0 : i32, i32
  }
  func.func @transform_5(%arg0: i32) -> (i32, i32) {
    %c0_i32 = arith.constant 0 : i32
    %c0_i32_0 = arith.constant 0 : i32
    %c0_i32_1 = arith.constant 0 : i32
    return %c0_i32, %c0_i32_0 : i32, i32
  }
  func.func @transform_6(%arg0: i32) -> (i32, i32) {
    %c0_i32 = arith.constant 0 : i32
    %c0_i32_0 = arith.constant 0 : i32
    %c0_i32_1 = arith.constant 0 : i32
    return %c0_i32, %c0_i32_0 : i32, i32
  }
  func.func @transform_7(%arg0: i32) -> (i32, i32) {
    %c0_i32 = arith.constant 0 : i32
    %c0_i32_0 = arith.constant 0 : i32
    %c0_i32_1 = arith.constant 0 : i32
    return %c0_i32, %c0_i32_0 : i32, i32
  }
  func.func @transform_8(%arg0: i32) -> (i32, i32) {
    %c0_i32 = arith.constant 0 : i32
    %c0_i32_0 = arith.constant 0 : i32
    %c0_i32_1 = arith.constant 0 : i32
    return %c0_i32, %c0_i32_0 : i32, i32
  }
  func.func @transform_9(%arg0: i32) -> (i32, i32) {
    %c0_i32 = arith.constant 0 : i32
    %c0_i32_0 = arith.constant 0 : i32
    %c0_i32_1 = arith.constant 0 : i32
    return %c0_i32, %c0_i32_0 : i32, i32
  }
  func.func @transform_10(%arg0: i32) -> (i32, i32) {
    %c0_i32 = arith.constant 0 : i32
    %c0_i32_0 = arith.constant 0 : i32
    %c0_i32_1 = arith.constant 0 : i32
    return %c0_i32, %c0_i32_0 : i32, i32
  }
  func.func @transform_11(%arg0: i32) -> (i32, i32) {
    %c0_i32 = arith.constant 0 : i32
    %c0_i32_0 = arith.constant 0 : i32
    return %c0_i32, %arg0 : i32, i32
  }
}

</mosaic_0001>

<llo_original>
// kernel: mlp_forward.1
$region0: #{mlp_forward.1}
  #allocation0 [shape = 'u32[]', space=smem, size = 0x4, offset = 0x4, fixed_abs, tag = 'smem constant byte address 0x4 - core index']
  #allocation1 [shape = 'u32[72,128]{1,0:T(1,128)}', space=vmem, size = 0x9000, scoped, tag = 'internal scratch']
  #allocation2 [shape = 'f32[1,1]{1,0:T(1,128)S(1)}', space=vmem, size = 0x200, scoped, tag = 'scoped memory for mlp_forward.1']
  %s0 = inlined_call_operand.vmem [shape: f32[8,12], index: 0, kind: input, shape index: {}]
  %s1 = inlined_call_operand.vmem [shape: bf16[12,256], index: 1, kind: input, shape index: {}]
  %s2 = inlined_call_operand.vmem [shape: f32[1,256], index: 2, kind: input, shape index: {}]
  %s3 = inlined_call_operand.vmem [shape: bf16[256,128], index: 3, kind: input, shape index: {}]
  %s4 = inlined_call_operand.vmem [shape: f32[1,128], index: 4, kind: input, shape index: {}]
  %s5 = inlined_call_operand.vmem [shape: bf16[128,64], index: 5, kind: input, shape index: {}]
  %s6 = inlined_call_operand.vmem [shape: f32[1,64], index: 6, kind: input, shape index: {}]
  %s7 = inlined_call_operand.vmem [shape: bf16[64,32], index: 7, kind: input, shape index: {}]
  %s8 = inlined_call_operand.vmem [shape: f32[1,32], index: 8, kind: input, shape index: {}]
  %s9 = inlined_call_operand.vmem [shape: f32[1,32], index: 9, kind: input, shape index: {}]
  %s10 = inlined_call_operand.<no memory space> [shape: f32[1,1], index: 10, kind: input, shape index: {}]
  %s11 = inlined_call_operand.hbm [shape: f32[1,8], index: 11, kind: output, shape index: {}]
  %s12 = sld [smem:[#allocation0]]
  $region54: #{mlp_forward.1} parent=0
    _
  %s14 = ssub.s32 1, %s12
  %s15 = scalar_select 0, %s14, %s12
  %v16 = vstv %s10
  %17 = vst [vmem:[#allocation2] sm:$0x1] %v16
  $region1: #{mlp_forward.1} parent=0
    #allocation3 [shape = 'u8[512]{0}', space=vmem, size = 0x400, scoped, tag = 'output window, operand 0, single buffered']
    #allocation4 [shape = 's32[1]{0}', space=sflag, size = 0x4, scoped, tag = 'scoped memory for mlp_forward.1']
    %18 = vsyncpa [#allocation4], 0
    // Predicated region
    $region2: #{mlp_forward.1} parent=1 // pred_check
      _
    $region3: #{mlp_forward.1} parent=1 // pred_check_branch
      %20 = sbr.rel (0) target = $region5
    $region4: #{mlp_forward.1} parent=1 // pred_region
      _
    $region5: #{mlp_forward.1} parent=1 // pred_fallthru
      _
    // Predicated region
    $region6: #{mlp_forward.1} parent=1 // pred_check
      _
    $region7: #{mlp_forward.1} parent=1 // pred_check_branch
      %22 = sbr.rel (0) target = $region9
    $region8: #{mlp_forward.1} parent=1 // pred_region
      _
    $region9: #{mlp_forward.1} parent=1 // pred_fallthru
      _
    // Predicated region
    $region10: #{mlp_forward.1} parent=1 // pred_check
      _
    $region11: #{mlp_forward.1} parent=1 // pred_check_branch
      %24 = sbr.rel (0) target = $region13
    $region12: #{mlp_forward.1} parent=1 // pred_region
      _
    $region13: #{mlp_forward.1} parent=1 // pred_fallthru
      _
    // Predicated region
    $region14: #{mlp_forward.1} parent=1 // pred_check
      _
    $region15: #{mlp_forward.1} parent=1 // pred_check_branch
      %26 = sbr.rel (0) target = $region17
    $region16: #{mlp_forward.1} parent=1 // pred_region
      _
    $region17: #{mlp_forward.1} parent=1 // pred_fallthru
      _
    // Predicated region
    $region18: #{mlp_forward.1} parent=1 // pred_check
      _
    $region19: #{mlp_forward.1} parent=1 // pred_check_branch
      %28 = sbr.rel (0) target = $region21
    $region20: #{mlp_forward.1} parent=1 // pred_region
      _
    $region21: #{mlp_forward.1} parent=1 // pred_fallthru
      _
    // Predicated region
    $region22: #{mlp_forward.1} parent=1 // pred_check
      _
    $region23: #{mlp_forward.1} parent=1 // pred_check_branch
      %30 = sbr.rel (0) target = $region25
    $region24: #{mlp_forward.1} parent=1 // pred_region
      _
    $region25: #{mlp_forward.1} parent=1 // pred_fallthru
      _
    // Predicated region
    $region26: #{mlp_forward.1} parent=1 // pred_check
      _
    $region27: #{mlp_forward.1} parent=1 // pred_check_branch
      %32 = sbr.rel (0) target = $region29
    $region28: #{mlp_forward.1} parent=1 // pred_region
      _
    $region29: #{mlp_forward.1} parent=1 // pred_fallthru
      _
    // Predicated region
    $region30: #{mlp_forward.1} parent=1 // pred_check
      _
    $region31: #{mlp_forward.1} parent=1 // pred_check_branch
      %34 = sbr.rel (0) target = $region33
    $region32: #{mlp_forward.1} parent=1 // pred_region
      _
    $region33: #{mlp_forward.1} parent=1 // pred_fallthru
      _
    // Predicated region
    $region34: #{mlp_forward.1} parent=1 // pred_check
      _
    $region35: #{mlp_forward.1} parent=1 // pred_check_branch
      %36 = sbr.rel (0) target = $region37
    $region36: #{mlp_forward.1} parent=1 // pred_region
      _
    $region37: #{mlp_forward.1} parent=1 // pred_fallthru
      _
    // Predicated region
    $region38: #{mlp_forward.1} parent=1 // pred_check
      _
    $region39: #{mlp_forward.1} parent=1 // pred_check_branch
      %38 = sbr.rel (0) target = $region41
    $region40: #{mlp_forward.1} parent=1 // pred_region
      _
    $region41: #{mlp_forward.1} parent=1 // pred_fallthru
      _
    // Predicated region
    $region42: #{mlp_forward.1} parent=1 // pred_check
      _
    $region43: #{mlp_forward.1} parent=1 // pred_check_branch
      %40 = sbr.rel (0) target = $region45
    $region44: #{mlp_forward.1} parent=1 // pred_region
      _
    $region45: #{mlp_forward.1} parent=1 // pred_fallthru
      _
    %v42 = vld [vmem:[%s0] sm:$0xff]
    %v43 = vpack.c.bf16 %v42, %v42
    %v44 = vld [vmem:[%s1] sm:$0xff]
    %v45 = vld [vmem:[%s1 + $0x8] sm:$0x33]
    %v46 = vld [vmem:[%s2] sm:$0x3]
    %v48 = vperm.slane %v46, 0
    %v49 = vperm.slane %v46, 1
    %v54 = vunpack.c.l.b16 %v44
    %v55 = vunpack.c.h.b16 %v44
    %v56 = vunpack.c.l.b16 %v45
    %v57 = vunpack.c.h.b16 %v45
    %v58 = vpack.c.b16 %v56, %v54
    %v59 = vpack.c.b16 %v57, %v55
    %vm60 = vcmask 97280
    %v62 = vsel %vm60, %v43, 0
    %vm64 = vcmask 1045504
    %v66 = vsel %vm64, %v58, 0
    %v69 = vsel %vm64, %v59, 0
    %71 = vmatpush.bf16.msra.mxu0 0
    %72 = vmatpush.bf16.msra.mxu0 0
    %73 = vmatpush.bf16.msra.mxu0 0
    %74 = vmatpush.bf16.msra.mxu0 0
    %75 = vmatpush.bf16.msra.mxu0 0
    %76 = vmatpush.bf16.msra.mxu0 0
    %77 = vmatpush.bf16.msra.mxu0 0
    %78 = vmatpush.bf16.msra.mxu0 %v66
    %79 = vmatmul.bf16.gmra.mxu0 %v62
    %v80 = vpop.f32.mrf.mxu0
    %v81 = vadd.f32 %v48, %v80
    %v82 = vpop.f32.mrf.mxu0
    %83 = vdwg.mxu0
    %84 = vmatpush.bf16.msra.mxu0 0
    %85 = vmatpush.bf16.msra.mxu0 0
    %86 = vmatpush.bf16.msra.mxu0 0
    %87 = vmatpush.bf16.msra.mxu0 0
    %88 = vmatpush.bf16.msra.mxu0 0
    %89 = vmatpush.bf16.msra.mxu0 0
    %90 = vmatpush.bf16.msra.mxu0 0
    %91 = vmatpush.bf16.msra.mxu0 %v69
    %92 = vmatmul.bf16.gmra.mxu0 %v62
    %v93 = vpop.f32.mrf.mxu0
    %v94 = vadd.f32 %v49, %v93
    %v95 = vpop.f32.mrf.mxu0
    %96 = vdwg.mxu0
    %v97 = vmax.f32 %v81, 0.0
    %v98 = vmax.f32 %v94, 0.0
    %v99 = vpack.c.bf16 %v97, %v97
    %v100 = vpack.c.bf16 %v98, %v98
    %v101 = vld [vmem:[%s3] sm:$0xf]
    %v102 = vld [vmem:[%s3 + $0x4] sm:$0xf]
    %v103 = vld [vmem:[%s3 + $0x8] sm:$0xf]
    %v104 = vld [vmem:[%s3 + $0xc] sm:$0xf]
    %v105 = vld [vmem:[%s3 + $0x10] sm:$0xf]
    %v106 = vld [vmem:[%s3 + $0x14] sm:$0xf]
    %v107 = vld [vmem:[%s3 + $0x18] sm:$0xf]
    %v108 = vld [vmem:[%s3 + $0x1c] sm:$0xf]
    %v109 = vld [vmem:[%s3 + $0x20] sm:$0xf]
    %v110 = vld [vmem:[%s3 + $0x24] sm:$0xf]
    %v111 = vld [vmem:[%s3 + $0x28] sm:$0xf]
    %v112 = vld [vmem:[%s3 + $0x2c] sm:$0xf]
    %v113 = vld [vmem:[%s3 + $0x30] sm:$0xf]
    %v114 = vld [vmem:[%s3 + $0x34] sm:$0xf]
    %v115 = vld [vmem:[%s3 + $0x38] sm:$0xf]
    %v116 = vld [vmem:[%s3 + $0x3c] sm:$0xf]
    %v117 = vld [vmem:[%s3 + $0x40] sm:$0xf]
    %v118 = vld [vmem:[%s3 + $0x44] sm:$0xf]
    %v119 = vld [vmem:[%s3 + $0x48] sm:$0xf]
    %v120 = vld [vmem:[%s3 + $0x4c] sm:$0xf]
    %v121 = vld [vmem:[%s3 + $0x50] sm:$0xf]
    %v122 = vld [vmem:[%s3 + $0x54] sm:$0xf]
    %v123 = vld [vmem:[%s3 + $0x58] sm:$0xf]
    %v124 = vld [vmem:[%s3 + $0x5c] sm:$0xf]
    %v125 = vld [vmem:[%s3 + $0x60] sm:$0xf]
    %v126 = vld [vmem:[%s3 + $0x64] sm:$0xf]
    %v127 = vld [vmem:[%s3 + $0x68] sm:$0xf]
    %v128 = vld [vmem:[%s3 + $0x6c] sm:$0xf]
    %v129 = vld [vmem:[%s3 + $0x70] sm:$0xf]
    %v130 = vld [vmem:[%s3 + $0x74] sm:$0xf]
    %v131 = vld [vmem:[%s3 + $0x78] sm:$0xf]
    %v132 = vld [vmem:[%s3 + $0x7c] sm:$0xf]
    %v133 = vld [vmem:[%s4] sm:$0x1]
    %v135 = vperm.slane %v133, 0
    %v169 = vunpack.c.l.b16 %v101
    %v170 = vunpack.c.l.b16 %v102
    %v171 = vunpack.c.l.b16 %v103
    %v172 = vunpack.c.l.b16 %v104
    %v173 = vunpack.c.l.b16 %v105
    %v174 = vunpack.c.l.b16 %v106
    %v175 = vunpack.c.l.b16 %v107
    %v176 = vunpack.c.l.b16 %v108
    %v177 = vunpack.c.l.b16 %v109
    %v178 = vunpack.c.l.b16 %v110
    %v179 = vunpack.c.l.b16 %v111
    %v180 = vunpack.c.l.b16 %v112
    %v181 = vunpack.c.l.b16 %v113
    %v182 = vunpack.c.l.b16 %v114
    %v183 = vunpack.c.l.b16 %v115
    %v184 = vunpack.c.l.b16 %v116
    %v185 = vunpack.c.l.b16 %v117
    %v186 = vunpack.c.l.b16 %v118
    %v187 = vunpack.c.l.b16 %v119
    %v188 = vunpack.c.l.b16 %v120
    %v189 = vunpack.c.l.b16 %v121
    %v190 = vunpack.c.l.b16 %v122
    %v191 = vunpack.c.l.b16 %v123
    %v192 = vunpack.c.l.b16 %v124
    %v193 = vunpack.c.l.b16 %v125
    %v194 = vunpack.c.l.b16 %v126
    %v195 = vunpack.c.l.b16 %v127
    %v196 = vunpack.c.l.b16 %v128
    %v197 = vunpack.c.l.b16 %v129
    %v198 = vunpack.c.l.b16 %v130
    %v199 = vunpack.c.l.b16 %v131
    %v200 = vunpack.c.l.b16 %v132
    %v201 = vpack.c.b16 %v170, %v169
    %v202 = vpack.c.b16 %v172, %v171
    %v203 = vpack.c.b16 %v174, %v173
    %v204 = vpack.c.b16 %v176, %v175
    %v205 = vpack.c.b16 %v178, %v177
    %v206 = vpack.c.b16 %v180, %v179
    %v207 = vpack.c.b16 %v182, %v181
    %v208 = vpack.c.b16 %v184, %v183
    %v209 = vpack.c.b16 %v186, %v185
    %v210 = vpack.c.b16 %v188, %v187
    %v211 = vpack.c.b16 %v190, %v189
    %v212 = vpack.c.b16 %v192, %v191
    %v213 = vpack.c.b16 %v194, %v193
    %v214 = vpack.c.b16 %v196, %v195
    %v215 = vpack.c.b16 %v198, %v197
    %v216 = vpack.c.b16 %v200, %v199
    %233 = vmatpush.bf16.msra.mxu0 %v208
    %234 = vmatpush.bf16.msra.mxu0 %v207
    %235 = vmatpush.bf16.msra.mxu0 %v206
    %236 = vmatpush.bf16.msra.mxu0 %v205
    %237 = vmatpush.bf16.msra.mxu0 %v204
    %238 = vmatpush.bf16.msra.mxu0 %v203
    %239 = vmatpush.bf16.msra.mxu0 %v202
    %240 = vmatpush.bf16.msra.mxu0 %v201
    %241 = vmatmul.bf16.gmra.mxu0 %v99
    %v242 = vpop.f32.mrf.mxu0
    %v243 = vadd.f32 %v135, %v242
    %v244 = vpop.f32.mrf.mxu0
    %245 = vdwg.mxu0
    %246 = vmatpush.bf16.msra.mxu0 %v216
    %247 = vmatpush.bf16.msra.mxu0 %v215
    %248 = vmatpush.bf16.msra.mxu0 %v214
    %249 = vmatpush.bf16.msra.mxu0 %v213
    %250 = vmatpush.bf16.msra.mxu0 %v212
    %251 = vmatpush.bf16.msra.mxu0 %v211
    %252 = vmatpush.bf16.msra.mxu0 %v210
    %253 = vmatpush.bf16.msra.mxu0 %v209
    %254 = vmatmul.bf16.gmra.mxu0 %v100
    %v255 = vpop.f32.mrf.mxu0
    %v256 = vadd.f32 %v243, %v255
    %v257 = vpop.f32.mrf.mxu0
    %258 = vdwg.mxu0
    %v259 = vmax.f32 %v256, 0.0
    %v260 = vpack.c.bf16 %v259, %v259
    %v261 = vld [vmem:[%s5] sm:$0xf]
    %v262 = vld [vmem:[%s5 + $0x4] sm:$0xf]
    %v263 = vld [vmem:[%s5 + $0x8] sm:$0xf]
    %v264 = vld [vmem:[%s5 + $0xc] sm:$0xf]
    %v265 = vld [vmem:[%s5 + $0x10] sm:$0xf]
    %v266 = vld [vmem:[%s5 + $0x14] sm:$0xf]
    %v267 = vld [vmem:[%s5 + $0x18] sm:$0xf]
    %v268 = vld [vmem:[%s5 + $0x1c] sm:$0xf]
    %v269 = vld [vmem:[%s5 + $0x20] sm:$0xf]
    %v270 = vld [vmem:[%s5 + $0x24] sm:$0xf]
    %v271 = vld [vmem:[%s5 + $0x28] sm:$0xf]
    %v272 = vld [vmem:[%s5 + $0x2c] sm:$0xf]
    %v273 = vld [vmem:[%s5 + $0x30] sm:$0xf]
    %v274 = vld [vmem:[%s5 + $0x34] sm:$0xf]
    %v275 = vld [vmem:[%s5 + $0x38] sm:$0xf]
    %v276 = vld [vmem:[%s5 + $0x3c] sm:$0xf]
    %v277 = vld [vmem:[%s6] sm:$0x1]
    %v279 = vperm.slane %v277, 0
    %v297 = vunpack.c.l.b16 %v261
    %v298 = vunpack.c.l.b16 %v262
    %v299 = vunpack.c.l.b16 %v263
    %v300 = vunpack.c.l.b16 %v264
    %v301 = vunpack.c.l.b16 %v265
    %v302 = vunpack.c.l.b16 %v266
    %v303 = vunpack.c.l.b16 %v267
    %v304 = vunpack.c.l.b16 %v268
    %v305 = vunpack.c.l.b16 %v269
    %v306 = vunpack.c.l.b16 %v270
    %v307 = vunpack.c.l.b16 %v271
    %v308 = vunpack.c.l.b16 %v272
    %v309 = vunpack.c.l.b16 %v273
    %v310 = vunpack.c.l.b16 %v274
    %v311 = vunpack.c.l.b16 %v275
    %v312 = vunpack.c.l.b16 %v276
    %v313 = vpack.c.b16 %v298, %v297
    %v314 = vpack.c.b16 %v300, %v299
    %v315 = vpack.c.b16 %v302, %v301
    %v316 = vpack.c.b16 %v304, %v303
    %v317 = vpack.c.b16 %v306, %v305
    %v318 = vpack.c.b16 %v308, %v307
    %v319 = vpack.c.b16 %v310, %v309
    %v320 = vpack.c.b16 %v312, %v311
    %329 = vmatpush.bf16.msra.mxu0 %v320
    %330 = vmatpush.bf16.msra.mxu0 %v319
    %331 = vmatpush.bf16.msra.mxu0 %v318
    %332 = vmatpush.bf16.msra.mxu0 %v317
    %333 = vmatpush.bf16.msra.mxu0 %v316
    %334 = vmatpush.bf16.msra.mxu0 %v315
    %335 = vmatpush.bf16.msra.mxu0 %v314
    %336 = vmatpush.bf16.msra.mxu0 %v313
    %337 = vmatmul.bf16.gmra.mxu0 %v260
    %v338 = vpop.f32.mrf.mxu0
    %v339 = vadd.f32 %v279, %v338
    %v340 = vpop.f32.mrf.mxu0
    %341 = vdwg.mxu0
    %v342 = vmax.f32 %v339, 0.0
    %v343 = vpack.c.bf16 %v342, %v342
    %v344 = vld [vmem:[%s7] sm:$0xf]
    %v345 = vld [vmem:[%s7 + $0x4] sm:$0xf]
    %v346 = vld [vmem:[%s7 + $0x8] sm:$0xf]
    %v347 = vld [vmem:[%s7 + $0xc] sm:$0xf]
    %v348 = vld [vmem:[%s7 + $0x10] sm:$0xf]
    %v349 = vld [vmem:[%s7 + $0x14] sm:$0xf]
    %v350 = vld [vmem:[%s7 + $0x18] sm:$0xf]
    %v351 = vld [vmem:[%s7 + $0x1c] sm:$0xf]
    %v352 = vld [vmem:[%s8] sm:$0x1]
    %v354 = vperm.slane %v352, 0
    %v364 = vunpack.c.l.b16 %v344
    %v365 = vunpack.c.l.b16 %v345
    %v366 = vunpack.c.l.b16 %v346
    %v367 = vunpack.c.l.b16 %v347
    %v368 = vunpack.c.l.b16 %v348
    %v369 = vunpack.c.l.b16 %v349
    %v370 = vunpack.c.l.b16 %v350
    %v371 = vunpack.c.l.b16 %v351
    %v372 = vpack.c.b16 %v365, %v364
    %v373 = vpack.c.b16 %v367, %v366
    %v374 = vpack.c.b16 %v369, %v368
    %v375 = vpack.c.b16 %v371, %v370
    %vm380 = vcmask 523264
    %v382 = vsel %vm380, %v343, 0
    %384 = vmatpush.bf16.msra.mxu0 0
    %385 = vmatpush.bf16.msra.mxu0 0
    %386 = vmatpush.bf16.msra.mxu0 0
    %387 = vmatpush.bf16.msra.mxu0 0
    %388 = vmatpush.bf16.msra.mxu0 %v375
    %389 = vmatpush.bf16.msra.mxu0 %v374
    %390 = vmatpush.bf16.msra.mxu0 %v373
    %391 = vmatpush.bf16.msra.mxu0 %v372
    %392 = vmatmul.bf16.gmra.mxu0 %v382
    %v393 = vpop.f32.mrf.mxu0
    %v394 = vadd.f32 %v354, %v393
    %v395 = vpop.f32.mrf.mxu0
    %396 = vdwg.mxu0
    %v397 = vmax.f32 %v394, 0.0
    %v398 = vld [vmem:[%s9] sm:$0x1]
    %v399 = vld [vmem:[#allocation2] sm:$0x1]
    %401 = vset.pattern.permute.xlu0 0
    %402 = vperm.xlu0 %401, %v399
    %v403 = vpop.permute.xlu0 %402
    %v405 = vperm.slane %v403, 0
    %vm406 = vcmask 261120
    %v408 = vsel %vm406, %v398, 0
    %v411 = vsel %vm406, %v397, 0
    %413 = vmatpush.xpose.msra.mxu0 0.0
    %414 = vmatpush.xpose.msra.mxu0 0.0
    %415 = vmatpush.xpose.msra.mxu0 0.0
    %416 = vmatpush.xpose.msra.mxu0 0.0
    %417 = vmatpush.xpose.msra.mxu0 0.0
    %418 = vmatpush.xpose.msra.mxu0 0.0
    %419 = vmatpush.xpose.msra.mxu0 0.0
    %420 = vmatpush.xpose.msra.mxu0 0.0
    %421 = vmatpush.xpose.msra.mxu0 0.0
    %422 = vmatpush.xpose.msra.mxu0 0.0
    %423 = vmatpush.xpose.msra.mxu0 0.0
    %424 = vmatpush.xpose.msra.mxu0 0.0
    %425 = vmatpush.xpose.msra.mxu0 0.0
    %426 = vmatpush.xpose.msra.mxu0 0.0
    %427 = vmatpush.xpose.msra.mxu0 0.0
    %428 = vmatpush.xpose.msra.mxu0 %v411
    %429 = vmatmul.f32.gmra.mxu0 %v408
    %v430 = vpop.f32.mrf.mxu0
    %v431 = vadd.f32 %v405, %v430
    %432 = vdwg.mxu0
    %vm433 = vcmask 57344
    %434 = vst.msk [vmem:[#allocation3] sm:$0x1] %vm433, %v431
    // Predicated region
    $region46: #{mlp_forward.1} parent=1 // pred_check
      _
    $region47: #{mlp_forward.1} parent=1 // pred_check_branch
      %436 = sbr.rel (0) target = $region49
    $region48: #{mlp_forward.1} parent=1 // pred_region
      %438 = vsyncadd [#allocation4], 0
      %s440 = sshll.u32 [#allocation3], 4
      %s441 = int_to_ptr.vmem [resolvable:$true] %s440
      %s442 = sshll.u32 %s11, 4
      %s443 = int_to_ptr.hbm [resolvable:$true] %s442
      %445 = dma.vmem_to_hbm [thread:$0]  %s441, 16, %s443, [#allocation4]
    $region49: #{mlp_forward.1} parent=1 // pred_fallthru
      _
    // Predicated region
    $region50: #{mlp_forward.1} parent=1 // pred_check
      _
    $region51: #{mlp_forward.1} parent=1 // pred_check_branch
      %447 = sbr.rel (0) target = $region53
    $region52: #{mlp_forward.1} parent=1 // pred_region
      %449 = dma.done [#allocation4], 16
    $region53: #{mlp_forward.1} parent=1 // pred_fallthru
      _
    %450 = vsyncpa [#allocation4], 1

</llo_original>
